<compile_context>
chip_gen: v5e
topology: v5e:2x2
jax: 0.10.0
libtpu: 0.0.40
codegen_flags: <defaults>
</compile_context>

<pallas_src>
import functools

import jax
import jax.numpy as jnp
import numpy as np
from jax.experimental import pallas as pl
from jax.experimental.pallas import tpu as pltpu


def _round_up(x, m):
    return ((x + m - 1) // m) * m


def _default_tile():
    # v7x has ~3.2 TB/s HBM, so the per-step-overhead knee sits higher.
    try:
        kind = jax.devices()[0].device_kind.lower()
    except Exception:
        kind = ""
    return 2048 if ("v7" in kind or "tpu7" in kind) else 1024


def _project_and_store(act_ref, w_ref, b_ref, rt_ref, glob_ref, hp, cs, precision):
    # Linear layer on the MXU (f32, HIGHEST precision -> is_multimer path).
    lin = jnp.dot(act_ref[...], w_ref[...],
                  preferred_element_type=jnp.float32,
                  precision=precision) + b_ref[...]
    rt = rt_ref[...]                       # [TILE, 12] = row-major 3x3 | translation
    px = lin[:, 0:hp]
    py = lin[:, cs:cs + hp]
    pz = lin[:, 2 * cs:2 * cs + hp]
    # Compute + store one component at a time: peak temporaries = lin + one
    # component, and the store slot starts draining while the VPU finishes
    # the remaining rotation math.
    gx = rt[:, 0:1] * px + rt[:, 1:2] * py + rt[:, 2:3] * pz + rt[:, 9:10]
    glob_ref[:, 0:hp] = gx.astype(glob_ref.dtype)
    gy = rt[:, 3:4] * px + rt[:, 4:5] * py + rt[:, 5:6] * pz + rt[:, 10:11]
    glob_ref[:, cs:cs + hp] = gy.astype(glob_ref.dtype)
    gz = rt[:, 6:7] * px + rt[:, 7:8] * py + rt[:, 8:9] * pz + rt[:, 11:12]
    glob_ref[:, 2 * cs:2 * cs + hp] = gz.astype(glob_ref.dtype)
    return lin


def point_projection_kernel_global(act_ref, w_ref, b_ref, rt_ref, glob_ref,
                                   *, hp, cs, precision):
    _project_and_store(act_ref, w_ref, b_ref, rt_ref, glob_ref, hp, cs, precision)


def point_projection_kernel_both(act_ref, w_ref, b_ref, rt_ref, glob_ref, loc_ref,
                                 *, hp, cs, precision):
    lin = _project_and_store(act_ref, w_ref, b_ref, rt_ref, glob_ref, hp, cs,
                             precision)
    loc_ref[...] = lin.astype(loc_ref.dtype)


def point_projection(activations, weight, bias, rot_mats, trans,
                     no_heads, num_points, return_local_points=False,
                     tile=None, out_dtype=jnp.float32,
                     precision=jax.lax.Precision.HIGHEST):
    """activations [B,N,C]; weight [H*3*P, C] (PyTorch nn.Linear layout); bias
    [H*3*P]; rot_mats [B,N,3,3]; trans [B,N,3].  Returns points_global
    [B,N,H,P,3] (and points_local if requested).  `tile` is the row tile."""
    B, N, C = activations.shape
    H, P = no_heads, num_points
    HP = H * P
    BN = B * N

    # Packed component-major output layout: component c occupies lanes
    # [c*cs, c*cs + HP) of a W-wide slab.  Per-component 128-alignment is used
    # only when it does not widen the slab (HP close to / multiple of 128);
    # otherwise pack tightly so writeback is ~3*HP lanes, not 3*round_up(HP,128).
    if 3 * _round_up(HP, 128) == _round_up(3 * HP, 128):
        cs = _round_up(HP, 128)
    else:
        cs = HP
    W = _round_up(3 * cs, 128)

    # Row tiling: big tiles amortize the ~0.35us/step overhead; ensure >=2
    # grid steps (when rows allow) so ("parallel",) uses both TensorCores.
    if tile is None:
        tile = _default_tile()
    BN8 = _round_up(BN, 8)
    tile = max(8, min(_round_up(tile, 8), BN8))
    if tile >= BN8 and BN8 >= 16:
        tile = _round_up((BN + 1) // 2, 8)
    BNp = _round_up(BN, tile)
    grid = (BNp // tile,)

    f32 = jnp.float32
    # Glue: permute linear rows from PyTorch (h, comp, p) to component-major
    # (comp, h, p), place component c at columns [c*cs, c*cs+HP), zero-fill the
    # rest, and transpose to [C, W] for y = x @ W.
    w_cm = weight.reshape(H, 3, P, C).transpose(1, 0, 2, 3).reshape(3, HP, C)
    w_cm = jnp.pad(w_cm, ((0, 0), (0, cs - HP), (0, 0))).reshape(3 * cs, C)
    if W > 3 * cs:
        w_cm = jnp.pad(w_cm, ((0, W - 3 * cs), (0, 0)))
    w_perm = jnp.transpose(w_cm, (1, 0)).astype(f32)                  # [C, W]
    b_cm = bias.reshape(H, 3, P).transpose(1, 0, 2).reshape(3, HP)
    b_cm = jnp.pad(b_cm, ((0, 0), (0, cs - HP))).reshape(1, 3 * cs)
    if W > 3 * cs:
        b_cm = jnp.pad(b_cm, ((0, 0), (0, W - 3 * cs)))
    b_perm = b_cm.astype(f32)                                          # [1, W]

    act2 = activations.reshape(BN, C).astype(f32)
    # Merge rotation + translation into one [BN, 12] stream (single small DMA).
    rt2 = jnp.concatenate(
        [rot_mats.reshape(BN, 9), trans.reshape(BN, 3)], axis=-1).astype(f32)
    if BNp != BN:
        # TODO(synk): in-kernel last-tile row masking would avoid this pad pass.
        act2 = jnp.pad(act2, ((0, BNp - BN), (0, 0)))
        rt2 = jnp.pad(rt2, ((0, BNp - BN), (0, 0)))

    in_specs = [
        pl.BlockSpec((tile, C), lambda i: (i, 0)),
        pl.BlockSpec((C, W), lambda i: (0, 0)),     # weights resident across grid
        pl.BlockSpec((1, W), lambda i: (0, 0)),     # bias resident
        pl.BlockSpec((tile, 12), lambda i: (i, 0)),
    ]
    out_spec = pl.BlockSpec((tile, W), lambda i: (i, 0))
    n_out = 2 if return_local_points else 1

    # VMEM budget: double-buffered I/O tiles + resident weights/bias + in-kernel
    # temporaries (lin + component slices), with 1.5x headroom; capped for v7x.
    out_itemsize = jnp.dtype(out_dtype).itemsize
    io_bytes = 2 * (4 * tile * C + 4 * tile * 12 + n_out * out_itemsize * tile * W)
    resident_bytes = 4 * (C * W + W)
    temp_bytes = 4 * 4 * tile * max(W, 128)
    vmem_bytes = io_bytes + resident_bytes + temp_bytes
    vmem_limit = int(min(max(int(1.5 * vmem_bytes), 8 * 1024 * 1024),
                         48 * 1024 * 1024))

    compiler_params = pltpu.CompilerParams(
        dimension_semantics=("parallel",),
        vmem_limit_bytes=vmem_limit,
    )

    kern_kwargs = dict(hp=HP, cs=cs, precision=precision)
    if return_local_points:
        glob, loc = pl.pallas_call(
            functools.partial(point_projection_kernel_both, **kern_kwargs),
            out_shape=(jax.ShapeDtypeStruct((BNp, W), out_dtype),
                       jax.ShapeDtypeStruct((BNp, W), out_dtype)),
            grid_spec=pltpu.PrefetchScalarGridSpec(
                num_scalar_prefetch=0, grid=grid,
                in_specs=in_specs, out_specs=[out_spec, out_spec]),
            compiler_params=compiler_params,
        )(act2, w_perm, b_perm, rt2)
    else:
        glob = pl.pallas_call(
            functools.partial(point_projection_kernel_global, **kern_kwargs),
            out_shape=jax.ShapeDtypeStruct((BNp, W), out_dtype),
            grid_spec=pltpu.PrefetchScalarGridSpec(
                num_scalar_prefetch=0, grid=grid,
                in_specs=in_specs, out_specs=out_spec),
            compiler_params=compiler_params,
        )(act2, w_perm, b_perm, rt2)

    # Restore the PyTorch layout [B,N,H,P,3] (touches only the 3*HP real lanes).
    # TODO(synk): downstream IPA could consume the component-major [BN, 3, HP]
    # slab directly and skip this small extra transpose pass entirely.
    def _to_points(slab):
        comp = slab[:BN, :3 * cs].reshape(BN, 3, cs)[:, :, :HP]
        return comp.reshape(B, N, 3, H, P).transpose(0, 1, 3, 4, 2)

    points_global = _to_points(glob)
    if return_local_points:
        return points_global, _to_points(loc)
    return points_global


# ----------------------- pure-JAX reference ---------------------------------
def point_projection_ref(activations, weight, bias, rot_mats, trans, H, P):
    B, N, C = activations.shape
    hi = jax.lax.Precision.HIGHEST
    lin = jnp.einsum('bnc,oc->bno', activations, weight, precision=hi) + bias
    # PyTorch: view(...,H,3P) -> split into 3 chunks of P -> stack dim=-1
    pl_ = lin.reshape(B, N, H, 3, P)
    points_local = jnp.transpose(pl_, (0, 1, 2, 4, 3))               # [B,N,H,P,3]
    points_global = jnp.einsum('bnij,bnhpj->bnhpi', rot_mats, points_local,
                               precision=hi) + trans[:, :, None, None, :]
    return points_global, points_local


def quat_to_rot(q):
    q = q / jnp.linalg.norm(q, axis=-1, keepdims=True)
    w, x, y, z = q[..., 0], q[..., 1], q[..., 2], q[..., 3]
    R = jnp.stack([
        1 - 2 * (y * y + z * z), 2 * (x * y - w * z), 2 * (x * z + w * y),
        2 * (x * y + w * z), 1 - 2 * (x * x + z * z), 2 * (y * z - w * x),
        2 * (x * z - w * y), 2 * (y * z + w * x), 1 - 2 * (x * x + y * y),
    ], axis=-1)
    return R.reshape(q.shape[:-1] + (3, 3))


if __name__ == "__main__":
    C_HIDDEN = 32        # c_hidden
    NO_HEADS = 4         # no_heads
    NUM_POINTS = 4       # num_points
    # is_multimer=True -> float32-precision linear (precision=HIGHEST here).

    key = jax.random.PRNGKey(0)
    k_w, k_b = jax.random.split(key, 2)
    weight = jax.random.normal(k_w, (NO_HEADS * 3 * NUM_POINTS, C_HIDDEN),
                               dtype=jnp.float32) * 0.1
    bias = jax.random.normal(k_b, (NO_HEADS * 3 * NUM_POINTS,),
                             dtype=jnp.float32) * 0.1

    # --- Test 1: small module-consistent shapes, both outputs requested -----
    B, N = 2, 8
    k_act, k_q, k_t = jax.random.split(jax.random.PRNGKey(1), 3)
    activations = jax.random.normal(k_act, (B, N, C_HIDDEN), dtype=jnp.float32)
    rot_mats = quat_to_rot(jax.random.normal(k_q, (B, N, 4), dtype=jnp.float32))
    trans = jax.random.normal(k_t, (B, N, 3), dtype=jnp.float32)

    out_g, out_l = point_projection(activations, weight, bias, rot_mats, trans,
                                    NO_HEADS, NUM_POINTS,
                                    return_local_points=True)
    out_g = jax.block_until_ready(out_g)
    out_l = jax.block_until_ready(out_l)
    ref_g, ref_l = point_projection_ref(activations, weight, bias, rot_mats,
                                        trans, NO_HEADS, NUM_POINTS)
    np.testing.assert_allclose(np.asarray(out_g), np.asarray(ref_g),
                               rtol=2e-5, atol=2e-5)
    np.testing.assert_allclose(np.asarray(out_l), np.asarray(ref_l),
                               rtol=2e-5, atol=2e-5)
    assert out_g.shape == (B, N, NO_HEADS, NUM_POINTS, 3)

    # --- Test 2: B*N not a multiple of the tile (exercise row padding + grid)
    B2, N2 = 3, 70       # BN = 210, tile=64 -> padded to 256, grid = (4,)
    k_act2, k_q2, k_t2 = jax.random.split(jax.random.PRNGKey(2), 3)
    act2 = jax.random.normal(k_act2, (B2, N2, C_HIDDEN), dtype=jnp.float32)
    rot2 = quat_to_rot(jax.random.normal(k_q2, (B2, N2, 4), dtype=jnp.float32))
    tr2 = jax.random.normal(k_t2, (B2, N2, 3), dtype=jnp.float32)

    out2 = point_projection(act2, weight, bias, rot2, tr2,
                            NO_HEADS, NUM_POINTS, tile=64)
    out2 = jax.block_until_ready(out2)
    ref2, _ = point_projection_ref(act2, weight, bias, rot2, tr2,
                                   NO_HEADS, NUM_POINTS)
    np.testing.assert_allclose(np.asarray(out2), np.asarray(ref2),
                               rtol=2e-5, atol=2e-5)
    assert out2.shape == (B2, N2, NO_HEADS, NUM_POINTS, 3)

    print("KERNEL_OK")
</pallas_src>

<mosaic_0001>
module attributes {stable_mosaic.version = 11 : i64} {
  func.func @point_projection_kernel_both(%arg0: i32, %arg1: memref<8x32xf32, #tpu.memory_space<vmem>>, %arg2: memref<32x128xf32, #tpu.memory_space<vmem>>, %arg3: memref<1x128xf32, #tpu.memory_space<vmem>>, %arg4: memref<8x12xf32, #tpu.memory_space<vmem>>, %arg5: memref<8x128xf32, #tpu.memory_space<vmem>>, %arg6: memref<8x128xf32, #tpu.memory_space<vmem>>) attributes {dimension_semantics = [#tpu.dimension_semantics<parallel>], iteration_bounds = array<i64: 2>, scalar_prefetch = 0 : i64, scratch_operands = 0 : i64, tpu.core_type = #tpu.core_type<tc>, window_params = [{transform_indices = @transform_0, window_bounds = array<i64: 8, 32>}, {pipeline_mode = #tpu.pipeline_mode<synchronous>, transform_indices = @transform_1, window_bounds = array<i64: 32, 128>}, {pipeline_mode = #tpu.pipeline_mode<synchronous>, transform_indices = @transform_2, window_bounds = array<i64: 1, 128>}, {transform_indices = @transform_3, window_bounds = array<i64: 8, 12>}, {transform_indices = @transform_4, window_bounds = array<i64: 8, 128>}, {transform_indices = @transform_5, window_bounds = array<i64: 8, 128>}]} {
    %c0 = arith.constant 0 : index
    %c0_0 = arith.constant 0 : index
    %0 = vector.load %arg1[%c0, %c0_0] : memref<8x32xf32, #tpu.memory_space<vmem>>, vector<8x32xf32>
    %c0_1 = arith.constant 0 : index
    %c0_2 = arith.constant 0 : index
    %1 = vector.load %arg2[%c0_1, %c0_2] : memref<32x128xf32, #tpu.memory_space<vmem>>, vector<32x128xf32>
    %cst = arith.constant dense<0.000000e+00> : vector<8x128xf32>
    %2 = tpu.matmul %0, %1, %cst {dimension_numbers = #tpu.dot_dimension_numbers<[1], [0], [0], [1], [0, 0, 1, 1], [], []>, precision = #tpu.contract_precision<fp32>} : vector<8x32xf32>, vector<32x128xf32>, vector<8x128xf32> -> vector<8x128xf32>
    %c0_3 = arith.constant 0 : index
    %c0_4 = arith.constant 0 : index
    %3 = vector.load %arg3[%c0_3, %c0_4] : memref<1x128xf32, #tpu.memory_space<vmem>>, vector<1x128xf32>
    %4 = vector.broadcast %3 : vector<1x128xf32> to vector<8x128xf32>
    %5 = arith.addf %2, %4 : vector<8x128xf32>
    %c0_5 = arith.constant 0 : index
    %c0_6 = arith.constant 0 : index
    %6 = vector.load %arg4[%c0_5, %c0_6] : memref<8x12xf32, #tpu.memory_space<vmem>>, vector<8x12xf32>
    %7 = vector.extract_strided_slice %5 {offsets = [0, 0], sizes = [8, 16], strides = [1, 1]} : vector<8x128xf32> to vector<8x16xf32>
    %8 = vector.extract_strided_slice %5 {offsets = [0, 16], sizes = [8, 16], strides = [1, 1]} : vector<8x128xf32> to vector<8x16xf32>
    %9 = vector.extract_strided_slice %5 {offsets = [0, 32], sizes = [8, 16], strides = [1, 1]} : vector<8x128xf32> to vector<8x16xf32>
    %10 = vector.extract_strided_slice %6 {offsets = [0, 0], sizes = [8, 1], strides = [1, 1]} : vector<8x12xf32> to vector<8x1xf32>
    %11 = vector.broadcast %10 : vector<8x1xf32> to vector<8x16xf32>
    %12 = arith.mulf %11, %7 : vector<8x16xf32>
    %13 = vector.extract_strided_slice %6 {offsets = [0, 1], sizes = [8, 1], strides = [1, 1]} : vector<8x12xf32> to vector<8x1xf32>
    %14 = vector.broadcast %13 : vector<8x1xf32> to vector<8x16xf32>
    %15 = arith.mulf %14, %8 : vector<8x16xf32>
    %16 = arith.addf %12, %15 : vector<8x16xf32>
    %17 = vector.extract_strided_slice %6 {offsets = [0, 2], sizes = [8, 1], strides = [1, 1]} : vector<8x12xf32> to vector<8x1xf32>
    %18 = vector.broadcast %17 : vector<8x1xf32> to vector<8x16xf32>
    %19 = arith.mulf %18, %9 : vector<8x16xf32>
    %20 = arith.addf %16, %19 : vector<8x16xf32>
    %21 = vector.extract_strided_slice %6 {offsets = [0, 9], sizes = [8, 1], strides = [1, 1]} : vector<8x12xf32> to vector<8x1xf32>
    %22 = vector.broadcast %21 : vector<8x1xf32> to vector<8x16xf32>
    %23 = arith.addf %20, %22 : vector<8x16xf32>
    %c0_7 = arith.constant 0 : index
    %c0_8 = arith.constant 0 : index
    %24 = vector.load %arg5[%c0_7, %c0_8] : memref<8x128xf32, #tpu.memory_space<vmem>>, vector<8x16xf32>
    tpu.vector_store %arg5[%c0_7, %c0_8], %23 {strides = array<i32>} : memref<8x128xf32, #tpu.memory_space<vmem>>, vector<8x16xf32>,
    %25 = vector.extract_strided_slice %6 {offsets = [0, 3], sizes = [8, 1], strides = [1, 1]} : vector<8x12xf32> to vector<8x1xf32>
    %26 = vector.broadcast %25 : vector<8x1xf32> to vector<8x16xf32>
    %27 = arith.mulf %26, %7 : vector<8x16xf32>
    %28 = vector.extract_strided_slice %6 {offsets = [0, 4], sizes = [8, 1], strides = [1, 1]} : vector<8x12xf32> to vector<8x1xf32>
    %29 = vector.broadcast %28 : vector<8x1xf32> to vector<8x16xf32>
    %30 = arith.mulf %29, %8 : vector<8x16xf32>
    %31 = arith.addf %27, %30 : vector<8x16xf32>
    %32 = vector.extract_strided_slice %6 {offsets = [0, 5], sizes = [8, 1], strides = [1, 1]} : vector<8x12xf32> to vector<8x1xf32>
    %33 = vector.broadcast %32 : vector<8x1xf32> to vector<8x16xf32>
    %34 = arith.mulf %33, %9 : vector<8x16xf32>
    %35 = arith.addf %31, %34 : vector<8x16xf32>
    %36 = vector.extract_strided_slice %6 {offsets = [0, 10], sizes = [8, 1], strides = [1, 1]} : vector<8x12xf32> to vector<8x1xf32>
    %37 = vector.broadcast %36 : vector<8x1xf32> to vector<8x16xf32>
    %38 = arith.addf %35, %37 : vector<8x16xf32>
    %c0_9 = arith.constant 0 : index
    %c16 = arith.constant 16 : index
    %39 = vector.load %arg5[%c0_9, %c16] : memref<8x128xf32, #tpu.memory_space<vmem>>, vector<8x16xf32>
    tpu.vector_store %arg5[%c0_9, %c16], %38 {strides = array<i32>} : memref<8x128xf32, #tpu.memory_space<vmem>>, vector<8x16xf32>,
    %40 = vector.extract_strided_slice %6 {offsets = [0, 6], sizes = [8, 1], strides = [1, 1]} : vector<8x12xf32> to vector<8x1xf32>
    %41 = vector.broadcast %40 : vector<8x1xf32> to vector<8x16xf32>
    %42 = arith.mulf %41, %7 : vector<8x16xf32>
    %43 = vector.extract_strided_slice %6 {offsets = [0, 7], sizes = [8, 1], strides = [1, 1]} : vector<8x12xf32> to vector<8x1xf32>
    %44 = vector.broadcast %43 : vector<8x1xf32> to vector<8x16xf32>
    %45 = arith.mulf %44, %8 : vector<8x16xf32>
    %46 = arith.addf %42, %45 : vector<8x16xf32>
    %47 = vector.extract_strided_slice %6 {offsets = [0, 8], sizes = [8, 1], strides = [1, 1]} : vector<8x12xf32> to vector<8x1xf32>
    %48 = vector.broadcast %47 : vector<8x1xf32> to vector<8x16xf32>
    %49 = arith.mulf %48, %9 : vector<8x16xf32>
    %50 = arith.addf %46, %49 : vector<8x16xf32>
    %51 = vector.extract_strided_slice %6 {offsets = [0, 11], sizes = [8, 1], strides = [1, 1]} : vector<8x12xf32> to vector<8x1xf32>
    %52 = vector.broadcast %51 : vector<8x1xf32> to vector<8x16xf32>
    %53 = arith.addf %50, %52 : vector<8x16xf32>
    %c0_10 = arith.constant 0 : index
    %c32 = arith.constant 32 : index
    %54 = vector.load %arg5[%c0_10, %c32] : memref<8x128xf32, #tpu.memory_space<vmem>>, vector<8x16xf32>
    tpu.vector_store %arg5[%c0_10, %c32], %53 {strides = array<i32>} : memref<8x128xf32, #tpu.memory_space<vmem>>, vector<8x16xf32>,
    %c0_11 = arith.constant 0 : index
    %c0_12 = arith.constant 0 : index
    %55 = vector.load %arg6[%c0_11, %c0_12] : memref<8x128xf32, #tpu.memory_space<vmem>>, vector<8x128xf32>
    tpu.vector_store %arg6[%c0_11, %c0_12], %5 {strides = array<i32>} : memref<8x128xf32, #tpu.memory_space<vmem>>, vector<8x128xf32>,
    return
  }
  func.func @transform_0(%arg0: i32) -> (i32, i32) {
    %c0_i32 = arith.constant 0 : i32
    %c0_i32_0 = arith.constant 0 : i32
    return %arg0, %c0_i32 : i32, i32
  }
  func.func @transform_1(%arg0: i32) -> (i32, i32) {
    %c0_i32 = arith.constant 0 : i32
    %c0_i32_0 = arith.constant 0 : i32
    %c0_i32_1 = arith.constant 0 : i32
    return %c0_i32, %c0_i32_0 : i32, i32
  }
  func.func @transform_2(%arg0: i32) -> (i32, i32) {
    %c0_i32 = arith.constant 0 : i32
    %c0_i32_0 = arith.constant 0 : i32
    %c0_i32_1 = arith.constant 0 : i32
    return %c0_i32, %c0_i32_0 : i32, i32
  }
  func.func @transform_3(%arg0: i32) -> (i32, i32) {
    %c0_i32 = arith.constant 0 : i32
    %c0_i32_0 = arith.constant 0 : i32
    return %arg0, %c0_i32 : i32, i32
  }
  func.func @transform_4(%arg0: i32) -> (i32, i32) {
    %c0_i32 = arith.constant 0 : i32
    %c0_i32_0 = arith.constant 0 : i32
    return %arg0, %c0_i32 : i32, i32
  }
  func.func @transform_5(%arg0: i32) -> (i32, i32) {
    %c0_i32 = arith.constant 0 : i32
    %c0_i32_0 = arith.constant 0 : i32
    return %arg0, %c0_i32 : i32, i32
  }
}

</mosaic_0001>

<llo_original>
// kernel: tpu_custom_call.1
$region0: #{tpu_custom_call.1}
  #allocation0 [shape = 'u32[]', space=smem, size = 0x4, offset = 0x4, fixed_abs, tag = 'smem constant byte address 0x4 - core index']
  #allocation1 [shape = 'u32[72,128]{1,0:T(1,128)}', space=vmem, size = 0x9000, scoped, tag = 'internal scratch']
  %s0 = inlined_call_operand.hbm [shape: f32[16,32], index: 0, kind: input, shape index: {}]
  %s1 = inlined_call_operand.hbm [shape: f32[32,128], index: 1, kind: input, shape index: {}]
  %s2 = inlined_call_operand.vmem [shape: f32[1,128], index: 2, kind: input, shape index: {}]
  %s3 = inlined_call_operand.hbm [shape: f32[16,12], index: 3, kind: input, shape index: {}]
  %s4 = inlined_call_operand.hbm [shape: f32[16,128], index: 4, kind: output, shape index: {0}]
  %s5 = inlined_call_operand.hbm [shape: f32[16,128], index: 5, kind: output, shape index: {1}]
  %6 = xla_tuple %s4, %s5
  %s7 = sld [smem:[#allocation0]]
  $region69: #{tpu_custom_call.1} parent=0
    _
  %s9 = ssub.s32 1, %s7
  %s10 = scalar_select 0, %s9, %s7
  $region1: #{tpu_custom_call.1} parent=0
    #allocation2 [shape = 'u8[8192]{0}', space=vmem, size = 0x2000, scoped, tag = 'input window, operand 0']
    #allocation3 [shape = 's32[2]{0}', space=sflag, size = 0x8, scoped, tag = 'scoped memory for tpu_custom_call.1']
    #allocation4 [shape = 's32[2]{0}', space=sflag, size = 0x8, scoped, tag = 'scoped memory for tpu_custom_call.1']
    #allocation5 [shape = 'u8[16384]{0}', space=vmem, size = 0x4000, scoped, tag = 'input window, operand 1, single buffered']
    #allocation6 [shape = 's32[1]{0}', space=sflag, size = 0x4, scoped, tag = 'scoped memory for tpu_custom_call.1']
    #allocation7 [shape = 'u8[8192]{0}', space=vmem, size = 0x2000, scoped, tag = 'input window, operand 3']
    #allocation8 [shape = 'u8[8192]{0}', space=vmem, size = 0x2000, scoped, tag = 'output window, operand 0']
    #allocation9 [shape = 'u8[8192]{0}', space=vmem, size = 0x2000, scoped, tag = 'output window, operand 1']
    #allocation10 [shape = 's32[2]{0}', space=sflag, size = 0x8, scoped, tag = 'scoped memory for tpu_custom_call.1']
    %11 = vsyncpa [#allocation3], 0
    %s12 = scalar_lea.sflag [#allocation3], 1
    %13 = vsyncpa %s12, 0
    %14 = vsyncpa [#allocation6], 0
    %15 = vsyncpa [#allocation4], 0
    %s16 = scalar_lea.sflag [#allocation4], 1
    %17 = vsyncpa %s16, 0
    %18 = vsyncpa [#allocation10], 0
    %s19 = scalar_lea.sflag [#allocation10], 1
    %20 = vsyncpa %s19, 0
    loop: start=0, step=1, limit=4
    $region2: #{tpu_custom_call.1} parent=1 // loop_pre_header
      _
    $region3: #{tpu_custom_call.1} parent=1 // loop_header
      %s22 = sphi 0, %s26
      %p23 = scmp.ge.s32.totalorder %s22, 4
      %s32 = sphi 0, %s34
      %s35 = sphi 0, %s32
      %s36 = sphi 0, %s35
      %s52 = sphi 0, %s36
      %s56 = sphi 0, %s56
      %s58 = sphi 0, %s56
      %s59 = sphi 0, %s58
      %s73 = sphi 0, %s59
      %s77 = sphi 0, %s77
      %s79 = sphi 0, %s77
      %s80 = sphi 0, %s79
      %s94 = sphi 0, %s80
      %s100 = sphi 0, %s102
      %s103 = sphi 0, %s100
      %s104 = sphi 0, %s103
      %s120 = sphi 0, %s104
      %s126 = sphi 0, %s128
      %s129 = sphi 0, %s126
      %s130 = sphi 0, %s129
      %s146 = sphi 0, %s130
      %s152 = sphi 0, %s154
      %s155 = sphi 0, %s152
      %s156 = sphi 0, %s155
      %s172 = sphi 0, %s156
    $region4: #{tpu_custom_call.1} parent=1 // loop_header_branch
      %25 = sbr.rel (%p23) target = $region8
    $region5: #{tpu_custom_call.1} parent=1 // loop_body
      %s27 = ssub.s32 %s22, 1
      %s28 = ssub.s32 %s22, 2
      %s29 = sadd.s32 %s22, 1
      %s30 = ssub.s32 %s22, %s29
      %p31 = scmp.eq.s32.totalorder %s30, 0
      %s33 = sadd.s32 %s32, 1
      %s34 = scalar_select %p31, %s32, %s33
      %p37 = pneg %p31
      %p38 = scmp.eq.s32.totalorder %s22, 1
      %p39 = por %p37, %p38
      %p40 = scmp.ne.s32.totalorder %s32, %s35
      %p41 = scmp.eq.s32.totalorder %s22, 0
      %p42 = por %p40, %p41
      %p43 = scmp.ne.s32.totalorder %s32, %s35
      %p44 = scmp.eq.s32.totalorder %s27, 1
      %p45 = por %p43, %p44
      %p46 = scmp.ne.s32.totalorder %s35, %s36
      %p47 = scmp.eq.s32.totalorder %s27, 0
      %p48 = por %p46, %p47
      %p49 = scmp.ne.s32.totalorder %s35, %s36
      %p50 = scmp.eq.s32.totalorder %s28, 1
      %p51 = por %p49, %p50
      %p53 = scmp.ne.s32.totalorder %s36, %s52
      %p54 = scmp.eq.s32.totalorder %s28, 0
      %p55 = por %p53, %p54
      %s57 = sadd.s32 %s56, 1
      %p60 = scmp.eq.s32.totalorder %s22, 1
      %p61 = scmp.ne.s32.totalorder %s56, %s58
      %p62 = scmp.eq.s32.totalorder %s22, 0
      %p63 = por %p61, %p62
      %p64 = scmp.ne.s32.totalorder %s56, %s58
      %p65 = scmp.eq.s32.totalorder %s27, 1
      %p66 = por %p64, %p65
      %p67 = scmp.ne.s32.totalorder %s58, %s59
      %p68 = scmp.eq.s32.totalorder %s27, 0
      %p69 = por %p67, %p68
      %p70 = scmp.ne.s32.totalorder %s58, %s59
      %p71 = scmp.eq.s32.totalorder %s28, 1
      %p72 = por %p70, %p71
      %p74 = scmp.ne.s32.totalorder %s59, %s73
      %p75 = scmp.eq.s32.totalorder %s28, 0
      %p76 = por %p74, %p75
      %s78 = sadd.s32 %s77, 1
      %p81 = scmp.eq.s32.totalorder %s22, 1
      %p82 = scmp.ne.s32.totalorder %s77, %s79
      %p83 = scmp.eq.s32.totalorder %s22, 0
      %p84 = por %p82, %p83
      %p85 = scmp.ne.s32.totalorder %s77, %s79
      %p86 = scmp.eq.s32.totalorder %s27, 1
      %p87 = por %p85, %p86
      %p88 = scmp.ne.s32.totalorder %s79, %s80
      %p89 = scmp.eq.s32.totalorder %s27, 0
      %p90 = por %p88, %p89
      %p91 = scmp.ne.s32.totalorder %s79, %s80
      %p92 = scmp.eq.s32.totalorder %s28, 1
      %p93 = por %p91, %p92
      %p95 = scmp.ne.s32.totalorder %s80, %s94
      %p96 = scmp.eq.s32.totalorder %s28, 0
      %p97 = por %p95, %p96
      %s98 = ssub.s32 %s22, %s29
      %p99 = scmp.eq.s32.totalorder %s98, 0
      %s101 = sadd.s32 %s100, 1
      %s102 = scalar_select %p99, %s100, %s101
      %p105 = pneg %p99
      %p106 = scmp.eq.s32.totalorder %s22, 1
      %p107 = por %p105, %p106
      %p108 = scmp.ne.s32.totalorder %s100, %s103
      %p109 = scmp.eq.s32.totalorder %s22, 0
      %p110 = por %p108, %p109
      %p111 = scmp.ne.s32.totalorder %s100, %s103
      %p112 = scmp.eq.s32.totalorder %s27, 1
      %p113 = por %p111, %p112
      %p114 = scmp.ne.s32.totalorder %s103, %s104
      %p115 = scmp.eq.s32.totalorder %s27, 0
      %p116 = por %p114, %p115
      %p117 = scmp.ne.s32.totalorder %s103, %s104
      %p118 = scmp.eq.s32.totalorder %s28, 1
      %p119 = por %p117, %p118
      %p121 = scmp.ne.s32.totalorder %s104, %s120
      %p122 = scmp.eq.s32.totalorder %s28, 0
      %p123 = por %p121, %p122
      %s124 = ssub.s32 %s22, %s29
      %p125 = scmp.eq.s32.totalorder %s124, 0
      %s127 = sadd.s32 %s126, 1
      %s128 = scalar_select %p125, %s126, %s127
      %p131 = pneg %p125
      %p132 = scmp.eq.s32.totalorder %s22, 1
      %p133 = por %p131, %p132
      %p134 = scmp.ne.s32.totalorder %s126, %s129
      %p135 = scmp.eq.s32.totalorder %s22, 0
      %p136 = por %p134, %p135
      %p137 = scmp.ne.s32.totalorder %s126, %s129
      %p138 = scmp.eq.s32.totalorder %s27, 1
      %p139 = por %p137, %p138
      %p140 = scmp.ne.s32.totalorder %s129, %s130
      %p141 = scmp.eq.s32.totalorder %s27, 0
      %p142 = por %p140, %p141
      %p143 = scmp.ne.s32.totalorder %s129, %s130
      %p144 = scmp.eq.s32.totalorder %s28, 1
      %p145 = por %p143, %p144
      %p147 = scmp.ne.s32.totalorder %s130, %s146
      %p148 = scmp.eq.s32.totalorder %s28, 0
      %p149 = por %p147, %p148
      %s150 = ssub.s32 %s22, %s29
      %p151 = scmp.eq.s32.totalorder %s150, 0
      %s153 = sadd.s32 %s152, 1
      %s154 = scalar_select %p151, %s152, %s153
      %p157 = pneg %p151
      %p158 = scmp.eq.s32.totalorder %s22, 1
      %p159 = por %p157, %p158
      %p160 = scmp.ne.s32.totalorder %s152, %s155
      %p161 = scmp.eq.s32.totalorder %s22, 0
      %p162 = por %p160, %p161
      %p163 = scmp.ne.s32.totalorder %s152, %s155
      %p164 = scmp.eq.s32.totalorder %s27, 1
      %p165 = por %p163, %p164
      %p166 = scmp.ne.s32.totalorder %s155, %s156
      %p167 = scmp.eq.s32.totalorder %s27, 0
      %p168 = por %p166, %p167
      %p169 = scmp.ne.s32.totalorder %s155, %s156
      %p170 = scmp.eq.s32.totalorder %s28, 1
      %p171 = por %p169, %p170
      %p173 = scmp.ne.s32.totalorder %s156, %s172
      %p174 = scmp.eq.s32.totalorder %s28, 0
      %p175 = por %p173, %p174
      %p176 = scmp.le.s32.totalorder 1, %s22
      %p177 = scmp.lt.s32.totalorder %s22, 3
      %p178 = pnand %p176, %p177
      %p179 = pneg %p178
      // Predicated region
      $region9: #{tpu_custom_call.1} parent=5 // pred_check
        _
      $region10: #{tpu_custom_call.1} parent=5 // pred_check_branch
        %181 = sbr.rel (%p178) target = $region12
      $region11: #{tpu_custom_call.1} parent=5 // pred_region
        %s182 = ssub.s32 %s22, 1
        // Predicated region
        $region13: #{tpu_custom_call.1} parent=11 // pred_check
          %p183 = pneg %p69
        $region14: #{tpu_custom_call.1} parent=11 // pred_check_branch
          %185 = sbr.rel (%p183) target = $region16
        $region15: #{tpu_custom_call.1} parent=11 // pred_region
          %187 = vsyncadd [#allocation6], 0
          %s188 = sshll.u32 %s1, 4
          %s189 = int_to_ptr.hbm [resolvable:$true] %s188
          %s190 = sshll.u32 [#allocation5], 4
          %s191 = int_to_ptr.vmem [resolvable:$true] %s190
          %196 = dma.hbm_to_vmem [thread:$0]  %s189, 512, %s191, [#allocation6], 128, 128, 8
        $region16: #{tpu_custom_call.1} parent=11 // pred_fallthru
          _
        // Predicated region
        $region17: #{tpu_custom_call.1} parent=11 // pred_check
          %p197 = pneg %p90
        $region18: #{tpu_custom_call.1} parent=11 // pred_check_branch
          %199 = sbr.rel (%p197) target = $region20
        $region19: #{tpu_custom_call.1} parent=11 // pred_region
          _
        $region20: #{tpu_custom_call.1} parent=11 // pred_fallthru
          _
      $region12: #{tpu_custom_call.1} parent=5 // pred_fallthru
        _
      %p200 = scmp.lt.s32.totalorder %s22, 2
      // Predicated region
      $region21: #{tpu_custom_call.1} parent=5 // pred_check
        %p201 = pneg %p200
      $region22: #{tpu_custom_call.1} parent=5 // pred_check_branch
        %203 = sbr.rel (%p201) target = $region24
      $region23: #{tpu_custom_call.1} parent=5 // pred_region
        // Predicated region
        $region25: #{tpu_custom_call.1} parent=23 // pred_check
          %p204 = pneg %p42
        $region26: #{tpu_custom_call.1} parent=23 // pred_check_branch
          %206 = sbr.rel (%p204) target = $region28
        $region27: #{tpu_custom_call.1} parent=23 // pred_region
          %s207 = sand.u32 %s22, 1
          %s208 = scalar_lea.sflag [#allocation3], %s207
          %s209 = sand.u32 %s32, 1
          %s210 = smul.addr %s209, 8
          %s211 = scalar_lea.vmem [#allocation2], %s210
          %213 = vsyncadd %s208, 0
          %s214 = smul.addr %s22, 8
          %s215 = scalar_lea.hbm %s0, %s214
          %s217 = sshll.u32 %s215, 4
          %s218 = int_to_ptr.hbm [resolvable:$true] %s217
          %s219 = sshll.u32 %s211, 4
          %s220 = int_to_ptr.vmem [resolvable:$true] %s219
          %222 = dma.hbm_to_vmem [thread:$0]  %s218, 128, %s220, %s208
        $region28: #{tpu_custom_call.1} parent=23 // pred_fallthru
          _
        // Predicated region
        $region29: #{tpu_custom_call.1} parent=23 // pred_check
          %p223 = pneg %p110
        $region30: #{tpu_custom_call.1} parent=23 // pred_check_branch
          %225 = sbr.rel (%p223) target = $region32
        $region31: #{tpu_custom_call.1} parent=23 // pred_region
          %s226 = sand.u32 %s22, 1
          %s227 = scalar_lea.sflag [#allocation3], %s226
          %s228 = sand.u32 %s100, 1
          %s229 = smul.addr %s228, 8
          %s230 = scalar_lea.vmem [#allocation7], %s229
          %232 = vsyncadd %s227, 0
          %s233 = smul.addr %s22, 8
          %s234 = scalar_lea.hbm %s3, %s233
          %s236 = sshll.u32 %s234, 4
          %s237 = int_to_ptr.hbm [resolvable:$true] %s236
          %s238 = sshll.u32 %s230, 4
          %s239 = int_to_ptr.vmem [resolvable:$true] %s238
          %241 = dma.hbm_to_vmem [thread:$0]  %s237, 128, %s239, %s227
        $region32: #{tpu_custom_call.1} parent=23 // pred_fallthru
          _
      $region24: #{tpu_custom_call.1} parent=5 // pred_fallthru
        _
      %p242 = scmp.le.s32.totalorder 1, %s22
      %p243 = scmp.lt.s32.totalorder %s22, 3
      %p244 = pnand %p242, %p243
      %p245 = pneg %p244
      // Predicated region
      $region33: #{tpu_custom_call.1} parent=5 // pred_check
        _
      $region34: #{tpu_custom_call.1} parent=5 // pred_check_branch
        %247 = sbr.rel (%p244) target = $region36
      $region35: #{tpu_custom_call.1} parent=5 // pred_region
        %s248 = ssub.s32 %s22, 1
        %s249 = sand.u32 %s27, 1
        %s250 = scalar_lea.sflag [#allocation3], %s249
        %s251 = sand.u32 %s35, 1
        %s252 = smul.addr %s251, 8
        %s253 = scalar_lea.vmem [#allocation2], %s252
        // Predicated region
        $region37: #{tpu_custom_call.1} parent=35 // pred_check
          %p254 = pneg %p48
        $region38: #{tpu_custom_call.1} parent=35 // pred_check_branch
          %256 = sbr.rel (%p254) target = $region40
        $region39: #{tpu_custom_call.1} parent=35 // pred_region
          %258 = dma.done %s250, 128
        $region40: #{tpu_custom_call.1} parent=35 // pred_fallthru
          _
        // Predicated region
        $region41: #{tpu_custom_call.1} parent=35 // pred_check
          %p259 = pneg %p69
        $region42: #{tpu_custom_call.1} parent=35 // pred_check_branch
          %261 = sbr.rel (%p259) target = $region44
        $region43: #{tpu_custom_call.1} parent=35 // pred_region
          %263 = dma.done [#allocation6], 512
        $region44: #{tpu_custom_call.1} parent=35 // pred_fallthru
          _
        %s264 = sand.u32 %s27, 1
        %s265 = scalar_lea.sflag [#allocation3], %s264
        %s266 = sand.u32 %s103, 1
        %s267 = smul.addr %s266, 8
        %s268 = scalar_lea.vmem [#allocation7], %s267
        // Predicated region
        $region45: #{tpu_custom_call.1} parent=35 // pred_check
          %p269 = pneg %p116
        $region46: #{tpu_custom_call.1} parent=35 // pred_check_branch
          %271 = sbr.rel (%p269) target = $region48
        $region47: #{tpu_custom_call.1} parent=35 // pred_region
          %273 = dma.done %s265, 128
        $region48: #{tpu_custom_call.1} parent=35 // pred_fallthru
          _
        %s274 = sand.u32 %s27, 1
        %s275 = scalar_lea.sflag [#allocation3], %s274
        %s276 = sand.u32 %s35, 1
        %s277 = smul.addr %s276, 8
        %s278 = scalar_lea.vmem [#allocation2], %s277
        %p279 = pneg %p48
        %p280 = pneg %p45
        %p281 = pneg %p69
        %p282 = pneg %p66
        %p283 = pneg %p90
        %p284 = pneg %p87
        %s285 = sand.u32 %s27, 1
        %s286 = scalar_lea.sflag [#allocation3], %s285
        %s287 = sand.u32 %s103, 1
        %s288 = smul.addr %s287, 8
        %s289 = scalar_lea.vmem [#allocation7], %s288
        %p290 = pneg %p116
        %p291 = pneg %p113
        %p292 = pneg %p142
        %p293 = pneg %p139
        %s294 = sand.u32 %s129, 1
        %s295 = scalar_lea.sflag [#allocation4], %s294
        %s296 = sand.u32 %s129, 1
        %s297 = smul.addr %s296, 8
        %s298 = scalar_lea.vmem [#allocation8], %s297
        %p299 = pneg %p168
        %p300 = pneg %p165
        %s301 = sand.u32 %s155, 1
        %s302 = scalar_lea.sflag [#allocation10], %s301
        %s303 = sand.u32 %s155, 1
        %s304 = smul.addr %s303, 8
        %s305 = scalar_lea.vmem [#allocation9], %s304
        %v306 = vld [vmem:[%s253] sm:$0xff]
        %v307 = vld [vmem:[#allocation5] sm:$0xff]
        %v308 = vld [vmem:[#allocation5 + $0x8] sm:$0xff]
        %v309 = vld [vmem:[#allocation5 + $0x10] sm:$0xff]
        %v310 = vld [vmem:[#allocation5 + $0x18] sm:$0xff]
        %v311 = vld [vmem:[%s2] sm:$0x1]
        %v313 = vperm.slane %v311, 0
        %vm315 = vcmask 261120
        %v317 = vsel %vm315, %v306, 0
        %319 = vmatpush.msra.mxu0 0.0
        %320 = vmatpush.msra.mxu0 0.0
        %321 = vmatpush.msra.mxu0 0.0
        %322 = vmatpush.msra.mxu0 0.0
        %323 = vmatpush.msra.mxu0 0.0
        %324 = vmatpush.msra.mxu0 0.0
        %325 = vmatpush.msra.mxu0 0.0
        %326 = vmatpush.msra.mxu0 0.0
        %327 = vmatpush.msra.mxu0 0.0
        %328 = vmatpush.msra.mxu0 0.0
        %329 = vmatpush.msra.mxu0 0.0
        %330 = vmatpush.msra.mxu0 0.0
        %v331 = vand.u32 %v310, 4294901760
        %332 = vmatpush.msra.mxu0 %v331
        %v333 = vand.u32 %v309, 4294901760
        %334 = vmatpush.msra.mxu0 %v333
        %v335 = vand.u32 %v308, 4294901760
        %336 = vmatpush.msra.mxu0 %v335
        %v337 = vand.u32 %v307, 4294901760
        %338 = vmatpush.msra.mxu0 %v337
        %v339 = vand.u32 %v317, 4294901760
        %v340 = vsub.f32 %v317, %v339
        %v341 = vand.u32 %v340, 4294901760
        %v342 = vsub.f32 %v340, %v341
        %v343 = vand.u32 %v342, 4294901760
        %344 = vmatmul.f32.gmra.mxu0 %v343
        %v345 = vpop.f32.mrf.mxu0
        %v346 = vadd.f32 %v313, %v345
        %347 = vdwg.mxu0
        %348 = vmatpush.msra.mxu0 0.0
        %349 = vmatpush.msra.mxu0 0.0
        %350 = vmatpush.msra.mxu0 0.0
        %351 = vmatpush.msra.mxu0 0.0
        %352 = vmatpush.msra.mxu0 0.0
        %353 = vmatpush.msra.mxu0 0.0
        %354 = vmatpush.msra.mxu0 0.0
        %355 = vmatpush.msra.mxu0 0.0
        %356 = vmatpush.msra.mxu0 0.0
        %357 = vmatpush.msra.mxu0 0.0
        %358 = vmatpush.msra.mxu0 0.0
        %359 = vmatpush.msra.mxu0 0.0
        %v360 = vand.u32 %v310, 4294901760
        %v361 = vsub.f32 %v310, %v360
        %v362 = vand.u32 %v361, 4294901760
        %v363 = vsub.f32 %v361, %v362
        %v364 = vand.u32 %v363, 4294901760
        %365 = vmatpush.msra.mxu0 %v364
        %v366 = vand.u32 %v309, 4294901760
        %v367 = vsub.f32 %v309, %v366
        %v368 = vand.u32 %v367, 4294901760
        %v369 = vsub.f32 %v367, %v368
        %v370 = vand.u32 %v369, 4294901760
        %371 = vmatpush.msra.mxu0 %v370
        %v372 = vand.u32 %v308, 4294901760
        %v373 = vsub.f32 %v308, %v372
        %v374 = vand.u32 %v373, 4294901760
        %v375 = vsub.f32 %v373, %v374
        %v376 = vand.u32 %v375, 4294901760
        %377 = vmatpush.msra.mxu0 %v376
        %v378 = vand.u32 %v307, 4294901760
        %v379 = vsub.f32 %v307, %v378
        %v380 = vand.u32 %v379, 4294901760
        %v381 = vsub.f32 %v379, %v380
        %v382 = vand.u32 %v381, 4294901760
        %383 = vmatpush.msra.mxu0 %v382
        %v384 = vand.u32 %v317, 4294901760
        %385 = vmatmul.f32.gmra.mxu0 %v384
        %v386 = vpop.f32.mrf.mxu0
        %v387 = vadd.f32 %v346, %v386
        %388 = vdwg.mxu0
        %389 = vmatpush.msra.mxu0 0.0
        %390 = vmatpush.msra.mxu0 0.0
        %391 = vmatpush.msra.mxu0 0.0
        %392 = vmatpush.msra.mxu0 0.0
        %393 = vmatpush.msra.mxu0 0.0
        %394 = vmatpush.msra.mxu0 0.0
        %395 = vmatpush.msra.mxu0 0.0
        %396 = vmatpush.msra.mxu0 0.0
        %397 = vmatpush.msra.mxu0 0.0
        %398 = vmatpush.msra.mxu0 0.0
        %399 = vmatpush.msra.mxu0 0.0
        %400 = vmatpush.msra.mxu0 0.0
        %v401 = vand.u32 %v310, 4294901760
        %v402 = vsub.f32 %v310, %v401
        %403 = vmatpush.msra.mxu0 %v402
        %v404 = vand.u32 %v309, 4294901760
        %v405 = vsub.f32 %v309, %v404
        %406 = vmatpush.msra.mxu0 %v405
        %v407 = vand.u32 %v308, 4294901760
        %v408 = vsub.f32 %v308, %v407
        %409 = vmatpush.msra.mxu0 %v408
        %v410 = vand.u32 %v307, 4294901760
        %v411 = vsub.f32 %v307, %v410
        %412 = vmatpush.msra.mxu0 %v411
        %v413 = vand.u32 %v317, 4294901760
        %v414 = vsub.f32 %v317, %v413
        %415 = vmatmul.f32.gmra.mxu0 %v414
        %v416 = vpop.f32.mrf.mxu0
        %v417 = vadd.f32 %v387, %v416
        %418 = vdwg.mxu0
        %419 = vmatpush.msra.mxu0 0.0
        %420 = vmatpush.msra.mxu0 0.0
        %421 = vmatpush.msra.mxu0 0.0
        %422 = vmatpush.msra.mxu0 0.0
        %423 = vmatpush.msra.mxu0 0.0
        %424 = vmatpush.msra.mxu0 0.0
        %425 = vmatpush.msra.mxu0 0.0
        %426 = vmatpush.msra.mxu0 0.0
        %427 = vmatpush.msra.mxu0 0.0
        %428 = vmatpush.msra.mxu0 0.0
        %429 = vmatpush.msra.mxu0 0.0
        %430 = vmatpush.msra.mxu0 0.0
        %v431 = vand.u32 %v310, 4294901760
        %432 = vmatpush.msra.mxu0 %v431
        %v433 = vand.u32 %v309, 4294901760
        %434 = vmatpush.msra.mxu0 %v433
        %v435 = vand.u32 %v308, 4294901760
        %436 = vmatpush.msra.mxu0 %v435
        %v437 = vand.u32 %v307, 4294901760
        %438 = vmatpush.msra.mxu0 %v437
        %v439 = vand.u32 %v317, 4294901760
        %v440 = vsub.f32 %v317, %v439
        %v441 = vand.u32 %v440, 4294901760
        %442 = vmatmul.f32.gmra.mxu0 %v441
        %v443 = vpop.f32.mrf.mxu0
        %v444 = vadd.f32 %v417, %v443
        %445 = vdwg.mxu0
        %446 = vmatpush.msra.mxu0 0.0
        %447 = vmatpush.msra.mxu0 0.0
        %448 = vmatpush.msra.mxu0 0.0
        %449 = vmatpush.msra.mxu0 0.0
        %450 = vmatpush.msra.mxu0 0.0
        %451 = vmatpush.msra.mxu0 0.0
        %452 = vmatpush.msra.mxu0 0.0
        %453 = vmatpush.msra.mxu0 0.0
        %454 = vmatpush.msra.mxu0 0.0
        %455 = vmatpush.msra.mxu0 0.0
        %456 = vmatpush.msra.mxu0 0.0
        %457 = vmatpush.msra.mxu0 0.0
        %v458 = vand.u32 %v310, 4294901760
        %v459 = vsub.f32 %v310, %v458
        %v460 = vand.u32 %v459, 4294901760
        %461 = vmatpush.msra.mxu0 %v460
        %v462 = vand.u32 %v309, 4294901760
        %v463 = vsub.f32 %v309, %v462
        %v464 = vand.u32 %v463, 4294901760
        %465 = vmatpush.msra.mxu0 %v464
        %v466 = vand.u32 %v308, 4294901760
        %v467 = vsub.f32 %v308, %v466
        %v468 = vand.u32 %v467, 4294901760
        %469 = vmatpush.msra.mxu0 %v468
        %v470 = vand.u32 %v307, 4294901760
        %v471 = vsub.f32 %v307, %v470
        %v472 = vand.u32 %v471, 4294901760
        %473 = vmatpush.msra.mxu0 %v472
        %v474 = vand.u32 %v317, 4294901760
        %475 = vmatmul.f32.gmra.mxu0 %v474
        %v476 = vpop.f32.mrf.mxu0
        %v477 = vadd.f32 %v444, %v476
        %478 = vdwg.mxu0
        %479 = vmatpush.msra.mxu0 0.0
        %480 = vmatpush.msra.mxu0 0.0
        %481 = vmatpush.msra.mxu0 0.0
        %482 = vmatpush.msra.mxu0 0.0
        %483 = vmatpush.msra.mxu0 0.0
        %484 = vmatpush.msra.mxu0 0.0
        %485 = vmatpush.msra.mxu0 0.0
        %486 = vmatpush.msra.mxu0 0.0
        %487 = vmatpush.msra.mxu0 0.0
        %488 = vmatpush.msra.mxu0 0.0
        %489 = vmatpush.msra.mxu0 0.0
        %490 = vmatpush.msra.mxu0 0.0
        %v491 = vand.u32 %v310, 4294901760
        %492 = vmatpush.msra.mxu0 %v491
        %v493 = vand.u32 %v309, 4294901760
        %494 = vmatpush.msra.mxu0 %v493
        %v495 = vand.u32 %v308, 4294901760
        %496 = vmatpush.msra.mxu0 %v495
        %v497 = vand.u32 %v307, 4294901760
        %498 = vmatpush.msra.mxu0 %v497
        %v499 = vand.u32 %v317, 4294901760
        %500 = vmatmul.f32.gmra.mxu0 %v499
        %v501 = vpop.f32.mrf.mxu0
        %v502 = vadd.f32 %v477, %v501
        %503 = vdwg.mxu0
        %v504 = vld [vmem:[%s268] sm:$0xff]
        %506 = vset.pattern.permute.xlu0 0
        %507 = vperm.xlu0 %506, %v504
        %v508 = vpop.permute.xlu0 %507
        %v510 = vmul.f32 %v508, %v502
        %511 = vset.pattern.permute.xlu0 1
        %512 = vperm.xlu0 %511, %v504
        %v513 = vpop.permute.xlu0 %512
        %v515 = vmul.f32 %v513, %v502
        %517 = vrot.lane.b32.xlu0 %v515, 112
        %v518 = vpop.permute.xlu0 %517
        %v520 = vadd.f32 %v510, %v518
        %521 = vset.pattern.permute.xlu0 2
        %522 = vperm.xlu0 %521, %v504
        %v523 = vpop.permute.xlu0 %522
        %v525 = vmul.f32 %v523, %v502
        %527 = vrot.lane.b32.xlu0 %v525, 96
        %v528 = vpop.permute.xlu0 %527
        %v530 = vadd.f32 %v520, %v528
        %531 = vset.pattern.permute.xlu0 9
        %532 = vperm.xlu0 %531, %v504
        %v533 = vpop.permute.xlu0 %532
        %v535 = vadd.f32 %v530, %v533
        %vm536 = vcmask 130048
        %537 = vst.msk [vmem:[%s298] sm:$0xff] %vm536, %v535
        %538 = vset.pattern.permute.xlu0 3
        %539 = vperm.xlu0 %538, %v504
        %v540 = vpop.permute.xlu0 %539
        %v542 = vmul.f32 %v540, %v502
        %543 = vset.pattern.permute.xlu0 4
        %544 = vperm.xlu0 %543, %v504
        %v545 = vpop.permute.xlu0 %544
        %v547 = vmul.f32 %v545, %v502
        %549 = vrot.lane.b32.xlu0 %v547, 112
        %v550 = vpop.permute.xlu0 %549
        %v552 = vadd.f32 %v542, %v550
        %553 = vset.pattern.permute.xlu0 5
        %554 = vperm.xlu0 %553, %v504
        %v555 = vpop.permute.xlu0 %554
        %v557 = vmul.f32 %v555, %v502
        %559 = vrot.lane.b32.xlu0 %v557, 96
        %v560 = vpop.permute.xlu0 %559
        %v562 = vadd.f32 %v552, %v560
        %563 = vset.pattern.permute.xlu0 10
        %564 = vperm.xlu0 %563, %v504
        %v565 = vpop.permute.xlu0 %564
        %v567 = vadd.f32 %v562, %v565
        %569 = vrot.lane.b32.xlu0 %v567, 16
        %v570 = vpop.permute.xlu0 %569
        %vm572 = vcmask 261248
        %573 = vst.msk [vmem:[%s298] sm:$0xff] %vm572, %v570
        %574 = vset.pattern.permute.xlu0 6
        %575 = vperm.xlu0 %574, %v504
        %v576 = vpop.permute.xlu0 %575
        %v578 = vmul.f32 %v576, %v502
        %579 = vset.pattern.permute.xlu0 7
        %580 = vperm.xlu0 %579, %v504
        %v581 = vpop.permute.xlu0 %580
        %v583 = vmul.f32 %v581, %v502
        %585 = vrot.lane.b32.xlu0 %v583, 112
        %v586 = vpop.permute.xlu0 %585
        %v588 = vadd.f32 %v578, %v586
        %589 = vset.pattern.permute.xlu0 8
        %590 = vperm.xlu0 %589, %v504
        %v591 = vpop.permute.xlu0 %590
        %v593 = vmul.f32 %v591, %v502
        %595 = vrot.lane.b32.xlu0 %v593, 96
        %v596 = vpop.permute.xlu0 %595
        %v598 = vadd.f32 %v588, %v596
        %599 = vset.pattern.permute.xlu0 11
        %600 = vperm.xlu0 %599, %v504
        %v601 = vpop.permute.xlu0 %600
        %v603 = vadd.f32 %v598, %v601
        %605 = vrot.lane.b32.xlu0 %v603, 32
        %v606 = vpop.permute.xlu0 %605
        %vm608 = vcmask 392448
        %609 = vst.msk [vmem:[%s298] sm:$0xff] %vm608, %v606
        %610 = vst [vmem:[%s305] sm:$0xff] %v502
        %s611 = sand.u32 %s129, 1
        %s612 = scalar_lea.sflag [#allocation4], %s611
        %s613 = sand.u32 %s129, 1
        %s614 = smul.addr %s613, 8
        %s615 = scalar_lea.vmem [#allocation8], %s614
        %s616 = sand.u32 %s155, 1
        %s617 = scalar_lea.sflag [#allocation10], %s616
        %s618 = sand.u32 %s155, 1
        %s619 = smul.addr %s618, 8
        %s620 = scalar_lea.vmem [#allocation9], %s619
        // Predicated region
        $region49: #{tpu_custom_call.1} parent=35 // pred_check
          %p621 = pneg %p139
        $region50: #{tpu_custom_call.1} parent=35 // pred_check_branch
          %623 = sbr.rel (%p621) target = $region52
        $region51: #{tpu_custom_call.1} parent=35 // pred_region
          %625 = vsyncadd %s612, 0
          %s626 = smul.addr %s27, 8
          %s627 = scalar_lea.hbm %s4, %s626
          %s629 = sshll.u32 %s615, 4
          %s630 = int_to_ptr.vmem [resolvable:$true] %s629
          %s631 = sshll.u32 %s627, 4
          %s632 = int_to_ptr.hbm [resolvable:$true] %s631
          %634 = dma.vmem_to_hbm [thread:$0]  %s630, 128, %s632, %s612
        $region52: #{tpu_custom_call.1} parent=35 // pred_fallthru
          _
        // Predicated region
        $region53: #{tpu_custom_call.1} parent=35 // pred_check
          %p635 = pneg %p165
        $region54: #{tpu_custom_call.1} parent=35 // pred_check_branch
          %637 = sbr.rel (%p635) target = $region56
        $region55: #{tpu_custom_call.1} parent=35 // pred_region
          %639 = vsyncadd %s617, 0
          %s640 = smul.addr %s27, 8
          %s641 = scalar_lea.hbm %s5, %s640
          %s643 = sshll.u32 %s620, 4
          %s644 = int_to_ptr.vmem [resolvable:$true] %s643
          %s645 = sshll.u32 %s641, 4
          %s646 = int_to_ptr.hbm [resolvable:$true] %s645
          %648 = dma.vmem_to_hbm [thread:$0]  %s644, 128, %s646, %s617
        $region56: #{tpu_custom_call.1} parent=35 // pred_fallthru
          _
      $region36: #{tpu_custom_call.1} parent=5 // pred_fallthru
        _
      %p649 = scmp.le.s32.totalorder 2, %s22
      // Predicated region
      $region57: #{tpu_custom_call.1} parent=5 // pred_check
        %p650 = pneg %p649
      $region58: #{tpu_custom_call.1} parent=5 // pred_check_branch
        %652 = sbr.rel (%p650) target = $region60
      $region59: #{tpu_custom_call.1} parent=5 // pred_region
        %s653 = ssub.s32 %s22, 2
        // Predicated region
        $region61: #{tpu_custom_call.1} parent=59 // pred_check
          %p654 = pneg %p145
        $region62: #{tpu_custom_call.1} parent=59 // pred_check_branch
          %656 = sbr.rel (%p654) target = $region64
        $region63: #{tpu_custom_call.1} parent=59 // pred_region
          %s657 = sand.u32 %s130, 1
          %s658 = scalar_lea.sflag [#allocation4], %s657
          %s659 = sand.u32 %s130, 1
          %s660 = smul.addr %s659, 8
          %s661 = scalar_lea.vmem [#allocation8], %s660
          %663 = dma.done %s658, 128
        $region64: #{tpu_custom_call.1} parent=59 // pred_fallthru
          _
        // Predicated region
        $region65: #{tpu_custom_call.1} parent=59 // pred_check
          %p664 = pneg %p171
        $region66: #{tpu_custom_call.1} parent=59 // pred_check_branch
          %666 = sbr.rel (%p664) target = $region68
        $region67: #{tpu_custom_call.1} parent=59 // pred_region
          %s667 = sand.u32 %s156, 1
          %s668 = scalar_lea.sflag [#allocation10], %s667
          %s669 = sand.u32 %s156, 1
          %s670 = smul.addr %s669, 8
          %s671 = scalar_lea.vmem [#allocation9], %s670
          %673 = dma.done %s668, 128
        $region68: #{tpu_custom_call.1} parent=59 // pred_fallthru
          _
      $region60: #{tpu_custom_call.1} parent=5 // pred_fallthru
        _
    $region6: #{tpu_custom_call.1} parent=1 // loop_footer
      %s26 = sadd.s32 1, %s22
    $region7: #{tpu_custom_call.1} parent=1 // loop_footer_branch
      %21 = sbr.rel target = $region3
    $region8: #{tpu_custom_call.1} parent=1 // loop_exit
      _
    %674 = vsyncpa [#allocation3], 1
    %s675 = scalar_lea.sflag [#allocation3], 1
    %676 = vsyncpa %s675, 1
    %677 = vsyncpa [#allocation6], 1
    %678 = vsyncpa [#allocation4], 1
    %s679 = scalar_lea.sflag [#allocation4], 1
    %680 = vsyncpa %s679, 1
    %681 = vsyncpa [#allocation10], 1
    %s682 = scalar_lea.sflag [#allocation10], 1
    %683 = vsyncpa %s682, 1

</llo_original>
